<compile_context>
chip_gen: v7x
topology: tpu7x:2x2x1
jax: 0.10.0
libtpu: 0.0.40
codegen_flags: <defaults>
</compile_context>

<pallas_src>
import functools

import jax
import jax.numpy as jnp
from jax import lax
from jax.experimental import pallas as pl
from jax.experimental.pallas import tpu as pltpu

_LANES = 128


def _sublane_multiple(dtype):
    # (8,128) vreg tile for 32-bit; sub-32-bit dtypes pack along sublanes.
    itemsize = jnp.dtype(dtype).itemsize
    return max(8, (4 // max(itemsize, 1)) * 8)


def _bce_focal_kernel(x_ref, t_ref, out_ref, *, alpha, gamma, total, tile_rows,
                      needs_mask):
    x = x_ref[...].astype(jnp.float32)          # (tile_rows, 128) logits
    t = t_ref[...].astype(jnp.float32)          # (tile_rows, 128) binary targets

    # Numerically stable sigmoid / log-sigmoid (no log(0), no 1-pt cancellation):
    #   e        = exp(-|x|)                      in (0, 1]
    #   log_pt   = log(sigmoid(x))    = min(x, 0) - log(1 + e)
    #   log_1mpt = log(1 - sigmoid(x)) = log_pt - x
    #   pt = sigmoid(x), 1 - pt = sigmoid(-x), both expressed via e (no 1-pt subtract)
    e = jnp.exp(-jnp.abs(x))
    log_pt = jnp.minimum(x, 0.0) - jnp.log(1.0 + e)
    log_1m_pt = log_pt - x
    inv = 1.0 / (1.0 + e)
    pos = x >= 0.0
    pt = jnp.where(pos, inv, e * inv)
    one_m_pt = jnp.where(pos, e * inv, inv)

    # gamma is a Python int for integer values -> lax.integer_pow (VPU), not EUP pow.
    loss = (-alpha * (one_m_pt ** gamma) * t * log_pt
            - (1.0 - alpha) * (pt ** gamma) * (1.0 - t) * log_1m_pt)

    def partial_sum(v):
        # Reduce only across vreg groups (cheap VPU adds); keep an (8,128)-clean
        # output block so the store is an unmasked vst.
        return jnp.sum(v.reshape(tile_rows // 8, 8, _LANES), axis=0)

    if needs_mask:
        # Static: only compiled in when tail padding / a ragged last block exists,
        # and only the last tile pays for the iota + compare + select.
        i = pl.program_id(0)
        last = pl.num_programs(0) - 1

        @pl.when(i != last)
        def _():
            out_ref[...] = partial_sum(loss)

        @pl.when(i == last)
        def _():
            r = lax.broadcasted_iota(jnp.int32, loss.shape, 0)
            c = lax.broadcasted_iota(jnp.int32, loss.shape, 1)
            flat_idx = (i * tile_rows + r) * _LANES + c
            out_ref[...] = partial_sum(jnp.where(flat_idx < total, loss, 0.0))
    else:
        out_ref[...] = partial_sum(loss)


def bce_focal_loss(predict, target, gamma=2, alpha=0.25, reduction="mean",
                   tile_rows=4096):
    """Focal BCE loss matching the PyTorch BCEFocalLoss forward pass."""
    assert predict.shape == target.shape
    total = int(predict.size)

    # Integer-valued gamma -> Python int so `**` lowers to integer_pow.
    gf = float(gamma)
    gamma = int(gf) if gf.is_integer() else gf

    # Keep native floating dtypes (kernel widens per-tile in VMEM); only promote
    # non-float inputs (bool / int targets) once in the wrapper.
    if not jnp.issubdtype(predict.dtype, jnp.floating):
        predict = predict.astype(jnp.float32)
    if not jnp.issubdtype(target.dtype, jnp.floating):
        target = target.astype(jnp.float32)

    mult = max(_sublane_multiple(predict.dtype), _sublane_multiple(target.dtype))
    rows = pl.cdiv(total, _LANES)
    rows_padded = ((rows + mult - 1) // mult) * mult        # minimal pad (< mult*128 elems)
    tile_rows = max(mult, min(int(tile_rows), rows_padded))
    tile_rows = (tile_rows // mult) * mult
    num_tiles = pl.cdiv(rows_padded, tile_rows)             # ragged last block allowed
    padded = rows_padded * _LANES
    needs_mask = (num_tiles * tile_rows * _LANES) > total

    x = jnp.ravel(predict)
    t = jnp.ravel(target)
    if padded > total:
        x = jnp.pad(x, (0, padded - total))
        t = jnp.pad(t, (0, padded - total))
    x = x.reshape(rows_padded, _LANES)
    t = t.reshape(rows_padded, _LANES)

    kernel = functools.partial(
        _bce_focal_kernel,
        alpha=float(alpha),
        gamma=gamma,
        total=total,
        tile_rows=tile_rows,
        needs_mask=needs_mask,
    )

    partial_sums = pl.pallas_call(
        kernel,
        out_shape=jax.ShapeDtypeStruct((num_tiles * 8, _LANES), jnp.float32),
        grid_spec=pltpu.PrefetchScalarGridSpec(
            num_scalar_prefetch=0,
            grid=(num_tiles,),
            in_specs=[
                pl.BlockSpec((tile_rows, _LANES), lambda i: (i, 0)),
                pl.BlockSpec((tile_rows, _LANES), lambda i: (i, 0)),
            ],
            out_specs=pl.BlockSpec((8, _LANES), lambda i: (i, 0)),
        ),
        compiler_params=pltpu.CompilerParams(
            dimension_semantics=("parallel",),   # independent partials -> shard over TCs
            vmem_limit_bytes=32 * 1024 * 1024,   # plenty for 2 x 2 MiB double-buffered blocks
        ),
    )(x, t)

    loss_sum = jnp.sum(partial_sums)
    if reduction == "mean":
        return loss_sum / jnp.float32(total)
    elif reduction == "sum":
        return loss_sum
    # TODO(synk): reduction='none' (elementwise loss output) not implemented here.
    raise NotImplementedError("reduction='none' not supported by this kernel")


def _reference(predict, target, gamma=2, alpha=0.25):
    pt = jax.nn.sigmoid(predict.astype(jnp.float32))
    tgt = target.astype(jnp.float32)
    loss = (-alpha * (1.0 - pt) ** gamma * tgt * jnp.log(pt)
            - (1.0 - alpha) * pt ** gamma * (1.0 - tgt) * jnp.log(1.0 - pt))
    return jnp.mean(loss)


if __name__ == "__main__":
    key = jax.random.PRNGKey(0)
    kx, kt = jax.random.split(key)

    shape = (2, 4, 16, 16)
    predict = jax.random.normal(kx, shape, dtype=jnp.float32)
    target = jax.random.bernoulli(kt, p=0.5, shape=shape).astype(jnp.float32)

    loss = bce_focal_loss(predict, target, gamma=2, alpha=0.25, reduction="mean")
    loss = jax.block_until_ready(loss)

    ref = _reference(predict, target, gamma=2, alpha=0.25)
    assert jnp.allclose(loss, ref, rtol=1e-5, atol=1e-6), (loss, ref)

    print("KERNEL_OK")
</pallas_src>

<mosaic_0001>
module attributes {stable_mosaic.version = 11 : i64} {
  func.func @_bce_focal_kernel(%arg0: i32, %arg1: memref<16x128xf32, #tpu.memory_space<vmem>>, %arg2: memref<16x128xf32, #tpu.memory_space<vmem>>, %arg3: memref<8x128xf32, #tpu.memory_space<vmem>>) attributes {dimension_semantics = [#tpu.dimension_semantics<parallel>], iteration_bounds = array<i64: 1>, scalar_prefetch = 0 : i64, scratch_operands = 0 : i64, tpu.core_type = #tpu.core_type<tc>, window_params = [{transform_indices = @transform_0, window_bounds = array<i64: 16, 128>}, {transform_indices = @transform_1, window_bounds = array<i64: 16, 128>}, {transform_indices = @transform_2, window_bounds = array<i64: 8, 128>}]} {
    %c0 = arith.constant 0 : index
    %c0_0 = arith.constant 0 : index
    %0 = vector.load %arg1[%c0, %c0_0] : memref<16x128xf32, #tpu.memory_space<vmem>>, vector<16x128xf32>
    %c0_1 = arith.constant 0 : index
    %c0_2 = arith.constant 0 : index
    %1 = vector.load %arg2[%c0_1, %c0_2] : memref<16x128xf32, #tpu.memory_space<vmem>>, vector<16x128xf32>
    %2 = math.absf %0 : vector<16x128xf32>
    %cst = arith.constant 0.000000e+00 : f32
    %3 = vector.broadcast %cst : f32 to vector<16x128xf32>
    %4 = arith.subf %3, %2 : vector<16x128xf32>
    %5 = math.exp %4 : vector<16x128xf32>
    %cst_3 = arith.constant 0.000000e+00 : f32
    %6 = vector.broadcast %cst_3 : f32 to vector<16x128xf32>
    %7 = arith.minimumf %0, %6 : vector<16x128xf32>
    %cst_4 = arith.constant 1.000000e+00 : f32
    %8 = vector.broadcast %cst_4 : f32 to vector<16x128xf32>
    %9 = arith.addf %8, %5 : vector<16x128xf32>
    %10 = math.log %9 : vector<16x128xf32>
    %11 = arith.subf %7, %10 : vector<16x128xf32>
    %12 = arith.subf %11, %0 : vector<16x128xf32>
    %cst_5 = arith.constant 1.000000e+00 : f32
    %13 = vector.broadcast %cst_5 : f32 to vector<16x128xf32>
    %14 = arith.addf %13, %5 : vector<16x128xf32>
    %cst_6 = arith.constant 1.000000e+00 : f32
    %15 = vector.broadcast %cst_6 : f32 to vector<16x128xf32>
    %16 = arith.divf %15, %14 : vector<16x128xf32>
    %cst_7 = arith.constant 0.000000e+00 : f32
    %17 = vector.broadcast %cst_7 : f32 to vector<16x128xf32>
    %18 = arith.cmpf oge, %0, %17 : vector<16x128xf32>
    %19 = arith.mulf %5, %16 : vector<16x128xf32>
    %20 = arith.select %18, %16, %19 : vector<16x128xi1>, vector<16x128xf32>
    %21 = arith.mulf %5, %16 : vector<16x128xf32>
    %22 = arith.select %18, %21, %16 : vector<16x128xi1>, vector<16x128xf32>
    %23 = arith.mulf %22, %22 : vector<16x128xf32>
    %cst_8 = arith.constant -2.500000e-01 : f32
    %24 = vector.broadcast %cst_8 : f32 to vector<16x128xf32>
    %25 = arith.mulf %24, %23 : vector<16x128xf32>
    %26 = arith.mulf %25, %1 : vector<16x128xf32>
    %27 = arith.mulf %26, %11 : vector<16x128xf32>
    %28 = arith.mulf %20, %20 : vector<16x128xf32>
    %cst_9 = arith.constant 7.500000e-01 : f32
    %29 = vector.broadcast %cst_9 : f32 to vector<16x128xf32>
    %30 = arith.mulf %29, %28 : vector<16x128xf32>
    %cst_10 = arith.constant 1.000000e+00 : f32
    %31 = vector.broadcast %cst_10 : f32 to vector<16x128xf32>
    %32 = arith.subf %31, %1 : vector<16x128xf32>
    %33 = arith.mulf %30, %32 : vector<16x128xf32>
    %34 = arith.mulf %33, %12 : vector<16x128xf32>
    %35 = arith.subf %27, %34 : vector<16x128xf32>
    %36 = vector.shape_cast %35 : vector<16x128xf32> to vector<2x8x128xf32>
    %cst_11 = arith.constant dense<0.000000e+00> : vector<8x128xf32>
    %37 = vector.multi_reduction <add>, %36, %cst_11 [0] : vector<2x8x128xf32> to vector<8x128xf32>
    %c0_12 = arith.constant 0 : index
    %c0_13 = arith.constant 0 : index
    %38 = vector.load %arg3[%c0_12, %c0_13] : memref<8x128xf32, #tpu.memory_space<vmem>>, vector<8x128xf32>
    tpu.vector_store %arg3[%c0_12, %c0_13], %37 {strides = array<i32>} : memref<8x128xf32, #tpu.memory_space<vmem>>, vector<8x128xf32>,
    return
  }
  func.func @transform_0(%arg0: i32) -> (i32, i32) {
    %c0_i32 = arith.constant 0 : i32
    %c0_i32_0 = arith.constant 0 : i32
    return %arg0, %c0_i32 : i32, i32
  }
  func.func @transform_1(%arg0: i32) -> (i32, i32) {
    %c0_i32 = arith.constant 0 : i32
    %c0_i32_0 = arith.constant 0 : i32
    return %arg0, %c0_i32 : i32, i32
  }
  func.func @transform_2(%arg0: i32) -> (i32, i32) {
    %c0_i32 = arith.constant 0 : i32
    %c0_i32_0 = arith.constant 0 : i32
    return %arg0, %c0_i32 : i32, i32
  }
}

</mosaic_0001>

<llo_original>
// kernel: tpu_custom_call.1
$region0: #{tpu_custom_call.1}
  #allocation0 [shape = 'u32[]', space=smem, size = 0x4, offset = 0x4, fixed_abs, tag = 'smem constant byte address 0x4 - core index']
  #allocation1 [shape = 'u32[144,128]{1,0:T(1,128)}', space=vmem, size = 0x12000, scoped, tag = 'internal scratch']
  %s0 = inlined_call_operand.hbm [shape: f32[16,128], index: 0, kind: input, shape index: {}]
  %s1 = inlined_call_operand.hbm [shape: f32[16,128], index: 1, kind: input, shape index: {}]
  %s2 = inlined_call_operand.hbm [shape: f32[8,128], index: 2, kind: output, shape index: {}]
  %s3 = sld [smem:[#allocation0]]
  $region26: #{tpu_custom_call.1} parent=0
    _
  %s5 = ssub.s32 1, %s3
  %s6 = scalar_select 0, %s5, %s3
  $region1: #{tpu_custom_call.1} parent=0
    #allocation2 [shape = 'u8[8192]{0}', space=vmem, size = 0x2000, scoped, tag = 'input window, operand 0, single buffered']
    #allocation3 [shape = 's32[1]{0}', space=sflag, size = 0x4, scoped, tag = 'scoped memory for tpu_custom_call.1']
    #allocation4 [shape = 's32[1]{0}', space=sflag, size = 0x4, scoped, tag = 'scoped memory for tpu_custom_call.1']
    #allocation5 [shape = 'u8[8192]{0}', space=vmem, size = 0x2000, scoped, tag = 'input window, operand 1, single buffered']
    #allocation6 [shape = 's32[1]{0}', space=sflag, size = 0x4, scoped, tag = 'scoped memory for tpu_custom_call.1']
    #allocation7 [shape = 'u8[4096]{0}', space=vmem, size = 0x1000, scoped, tag = 'output window, operand 0, single buffered']
    %7 = vsyncpa [#allocation3], 0
    %8 = vsyncpa [#allocation6], 0
    %9 = vsyncpa [#allocation4], 0
    // Predicated region
    $region2: #{tpu_custom_call.1} parent=1 // pred_check
      _
    $region3: #{tpu_custom_call.1} parent=1 // pred_check_branch
      %11 = sbr.rel (0) target = $region5
    $region4: #{tpu_custom_call.1} parent=1 // pred_region
      %s13 = ssub.s32 256, 256
      %14 = vsyncadd [#allocation3], %s13
      %s15 = sshll.u32 [#allocation2], 4
      %s16 = int_to_ptr.vmem [resolvable:$true] %s15
      %21 = dma.hbm_to_vmem [thread:$0]  %s0, 256, %s16, [#allocation3], 128, 128, 8
    $region5: #{tpu_custom_call.1} parent=1 // pred_fallthru
      _
    // Predicated region
    $region6: #{tpu_custom_call.1} parent=1 // pred_check
      _
    $region7: #{tpu_custom_call.1} parent=1 // pred_check_branch
      %23 = sbr.rel (0) target = $region9
    $region8: #{tpu_custom_call.1} parent=1 // pred_region
      %s25 = ssub.s32 256, 256
      %26 = vsyncadd [#allocation6], %s25
      %s27 = sshll.u32 [#allocation5], 4
      %s28 = int_to_ptr.vmem [resolvable:$true] %s27
      %33 = dma.hbm_to_vmem [thread:$0]  %s1, 256, %s28, [#allocation6], 128, 128, 8
    $region9: #{tpu_custom_call.1} parent=1 // pred_fallthru
      _
    // Predicated region
    $region10: #{tpu_custom_call.1} parent=1 // pred_check
      _
    $region11: #{tpu_custom_call.1} parent=1 // pred_check_branch
      %35 = sbr.rel (0) target = $region13
    $region12: #{tpu_custom_call.1} parent=1 // pred_region
      %36 = dma.done [#allocation3], 256
    $region13: #{tpu_custom_call.1} parent=1 // pred_fallthru
      _
    // Predicated region
    $region14: #{tpu_custom_call.1} parent=1 // pred_check
      _
    $region15: #{tpu_custom_call.1} parent=1 // pred_check_branch
      %38 = sbr.rel (0) target = $region17
    $region16: #{tpu_custom_call.1} parent=1 // pred_region
      %39 = dma.done [#allocation6], 256
    $region17: #{tpu_custom_call.1} parent=1 // pred_fallthru
      _
    %v40 = vld [vmem:[#allocation2] sm:$0xff]
    %v41 = vld [vmem:[#allocation2 + $0x8] sm:$0xff]
    %v42 = vld [vmem:[#allocation5] sm:$0xff]
    %v43 = vld [vmem:[#allocation5 + $0x8] sm:$0xff]
    %v44 = vand.u32 2147483647, %v40
    %v45 = vand.u32 2147483647, %v41
    %v46 = vsub.f32 0.0, %v44
    %v47 = vsub.f32 0.0, %v45
    %v48 = vmul.f32 %v46, 1.442695
    %v49 = vpow.pop %v48
    %v50 = vmul.f32 %v47, 1.442695
    %v51 = vpow.pop %v50
    %v52 = vmin.f32 %v40, 0.0
    %v53 = vmin.f32 %v41, 0.0
    %v54 = vadd.f32 %v49, 1.0
    %v55 = vadd.f32 %v51, 1.0
    %v56 = vlog2.pop %v54
    %v57 = vmul.f32 %v56, 0.6931472
    %v58 = vlog2.pop %v55
    %v59 = vmul.f32 %v58, 0.6931472
    %v60 = vsub.f32 %v52, %v57
    %v61 = vsub.f32 %v53, %v59
    %v62 = vsub.f32 %v60, %v40
    %v63 = vsub.f32 %v61, %v41
    %v64 = vrcp.pop %v54
    %v65 = vmul.f32 1.0, %v64
    %v66 = vrcp.pop %v55
    %v67 = vmul.f32 1.0, %v66
    %vm68 = vcmp.ge.f32.partialorder %v40, 0.0
    %vm69 = vcmp.ge.f32.partialorder %v41, 0.0
    %v70 = vmul.f32 %v49, %v65
    %v71 = vmul.f32 %v51, %v67
    %v72 = vsel %vm68, %v65, %v70
    %v73 = vsel %vm69, %v67, %v71
    %v74 = vsel %vm68, %v70, %v65
    %v75 = vsel %vm69, %v71, %v67
    %v76 = vmul.f32 %v74, %v74
    %v77 = vmul.f32 %v75, %v75
    %v78 = vmul.f32 %v76, -0.25
    %v79 = vmul.f32 %v77, -0.25
    %v80 = vmul.f32 %v78, %v42
    %v81 = vmul.f32 %v79, %v43
    %v82 = vmul.f32 %v80, %v60
    %v83 = vmul.f32 %v81, %v61
    %v84 = vmul.f32 %v72, %v72
    %v85 = vmul.f32 %v73, %v73
    %v86 = vmul.f32 %v84, 0.75
    %v87 = vmul.f32 %v85, 0.75
    %v88 = vsub.f32 1.0, %v42
    %v89 = vsub.f32 1.0, %v43
    %v90 = vmul.f32 %v86, %v88
    %v91 = vmul.f32 %v87, %v89
    %v92 = vmul.f32 %v90, %v62
    %v93 = vmul.f32 %v91, %v63
    %v94 = vsub.f32 %v82, %v92
    %v95 = vsub.f32 %v83, %v93
    %v96 = vadd.f32 %v94, %v95
    %97 = vst [vmem:[#allocation7] sm:$0xff] %v96
    // Predicated region
    $region18: #{tpu_custom_call.1} parent=1 // pred_check
      _
    $region19: #{tpu_custom_call.1} parent=1 // pred_check_branch
      %99 = sbr.rel (0) target = $region21
    $region20: #{tpu_custom_call.1} parent=1 // pred_region
      %s101 = ssub.s32 128, 128
      %102 = vsyncadd [#allocation4], %s101
      %s104 = sshll.u32 [#allocation7], 4
      %s105 = int_to_ptr.vmem [resolvable:$true] %s104
      %107 = dma.vmem_to_hbm [thread:$0]  %s105, 128, %s2, [#allocation4]
    $region21: #{tpu_custom_call.1} parent=1 // pred_fallthru
      _
    // Predicated region
    $region22: #{tpu_custom_call.1} parent=1 // pred_check
      _
    $region23: #{tpu_custom_call.1} parent=1 // pred_check_branch
      %109 = sbr.rel (0) target = $region25
    $region24: #{tpu_custom_call.1} parent=1 // pred_region
      %110 = dma.done [#allocation4], 128
    $region25: #{tpu_custom_call.1} parent=1 // pred_fallthru
      _
    %111 = vsyncpa [#allocation3], 1
    %112 = vsyncpa [#allocation6], 1
    %113 = vsyncpa [#allocation4], 1

</llo_original>
